<compile_context>
chip_gen: v7x
topology: tpu7x:2x2x1
jax: 0.10.0
libtpu: 0.0.40
codegen_flags: <defaults>
</compile_context>

<pallas_src>
import jax
import jax.numpy as jnp
from jax.experimental import pallas as pl
from jax.experimental.pallas import tpu as pltpu


def _round_up(x, m):
    return (x + m - 1) // m * m


def prepare_params(params):
    """One-time prep: pack the 5 (W, b) pairs into 2 resident slabs.

    params: list of (W, b) with W:(in, out), b:(1, out) (PyTorch Linear, stored transposed).

    Weight slab (bf16): per-layer blocks stacked along rows; each block's row count is
    padded to a multiple of 16 only for alignment (padded rows are never read — the kernel
    slices the exact (kin, kout) window), columns zero-padded to width = max(out dims).
    Bias slab (f32): one row per layer, same width.  Contraction dims are NOT padded.
    """
    in_dims = tuple(int(w.shape[0]) for w, _ in params)
    out_dims = tuple(int(w.shape[1]) for w, _ in params)
    width = max(out_dims)

    w_blocks, b_rows, offsets = [], [], []
    row = 0
    for (w, b), kin, kout in zip(params, in_dims, out_dims):
        offsets.append(row)
        rows_p = _round_up(kin, 16)
        wp = jnp.zeros((rows_p, width), jnp.float32).at[:kin, :kout].set(w.astype(jnp.float32))
        w_blocks.append(wp.astype(jnp.bfloat16))
        b_rows.append(jnp.zeros((1, width), jnp.float32).at[:, :kout].set(b.astype(jnp.float32)))
        row += rows_p

    return {
        "wslab": jnp.concatenate(w_blocks, axis=0),  # (sum rows_p, width) bf16
        "bslab": jnp.concatenate(b_rows, axis=0),    # (n_layers, width) f32
        "in_dims": in_dims,
        "out_dims": out_dims,
        "offsets": tuple(offsets),
    }


def _make_kernel(in_dims, out_dims, offsets):
    n_layers = len(in_dims)

    def kernel(x_ref, w_ref, b_ref, out_ref):
        h = x_ref[...]  # (TB, S) bf16
        for li in range(n_layers - 1):
            r0, kin, kout = offsets[li], in_dims[li], out_dims[li]
            y = jnp.dot(h, w_ref[r0:r0 + kin, :kout],
                        preferred_element_type=jnp.float32) + b_ref[li:li + 1, :kout]
            # sigmoid(y) = 0.5*tanh(0.5*y) + 0.5 : a single EUP transcendental per element.
            h = (0.5 * jnp.tanh(0.5 * y) + 0.5).astype(jnp.bfloat16)

        r0, kin, a = offsets[-1], in_dims[-1], out_dims[-1]
        logits = jnp.dot(h, w_ref[r0:r0 + kin, :a],
                         preferred_element_type=jnp.float32) + b_ref[n_layers - 1:n_layers, :a]

        # Numerically stable softmax over the (unpadded) action axis; exact divide so the
        # probabilities sum to 1 at f32 precision (downstream sampling / log-probs).
        m = jnp.max(logits, axis=-1, keepdims=True)
        e = jnp.exp(logits - m)
        out_ref[...] = (e / jnp.sum(e, axis=-1, keepdims=True)).astype(out_ref.dtype)

    return kernel


def discrete_policy_forward(x, prepared, *, block_b=2048, min_tiles=None):
    """x: (B, S) float32. prepared: output of prepare_params. Returns (B, A) f32 probs."""
    B, S = x.shape
    in_dims, out_dims = prepared["in_dims"], prepared["out_dims"]
    assert S == in_dims[0]
    a_dim = out_dims[-1]
    wslab, bslab = prepared["wslab"], prepared["bslab"]

    if min_tiles is None:
        # v7x has 2 TensorCores sharing the "parallel" batch axis; keep >= 2 tiles once the
        # batch is worth splitting.  The extra ~0.35us grid step on single-core v5e/v6e is
        # negligible against the per-tile work.
        min_tiles = 2 if B >= 64 else 1
    n_tiles = max(min_tiles, pl.cdiv(B, block_b))
    tb = _round_up(pl.cdiv(B, n_tiles), 16)      # bf16 activations -> 16-row sublane packing
    b_pad = n_tiles * tb

    # Batch-only pad + bf16 cast; allow_input_fusion on operand 0 lets XLA fuse this
    # producer into the pallas_call input instead of materializing a padded HBM copy.
    xp = jnp.pad(x.astype(jnp.bfloat16), ((0, b_pad - B), (0, 0)))

    flops = 2 * b_pad * sum(kin * kout for kin, kout in zip(in_dims, out_dims))
    transcendentals = b_pad * (sum(out_dims[:-1]) + a_dim)   # 4x tanh + softmax exp
    bytes_accessed = (xp.size * xp.dtype.itemsize
                      + wslab.size * wslab.dtype.itemsize
                      + bslab.size * bslab.dtype.itemsize
                      + b_pad * a_dim * 4)

    out = pl.pallas_call(
        _make_kernel(in_dims, out_dims, prepared["offsets"]),
        out_shape=jax.ShapeDtypeStruct((b_pad, a_dim), jnp.float32),
        grid=(n_tiles,),
        in_specs=[
            pl.BlockSpec((tb, S), lambda i: (i, 0)),          # batch-tiled activations
            pl.BlockSpec(wslab.shape, lambda i: (0, 0)),      # resident weight slab
            pl.BlockSpec(bslab.shape, lambda i: (0, 0)),      # resident bias slab
        ],
        out_specs=pl.BlockSpec((tb, a_dim), lambda i: (i, 0)),
        compiler_params=pltpu.CompilerParams(
            dimension_semantics=("parallel",),                # megacore: batch tiles across TCs
            allow_input_fusion=[True, False, False],
        ),
        cost_estimate=pl.CostEstimate(
            flops=flops, transcendentals=transcendentals, bytes_accessed=bytes_accessed),
    )(xp, wslab, bslab)

    return out[:B]


def init_params(key, s_dim, a_dim, hidden=64):
    """Deterministic init mirroring nn.Linear shapes (stored transposed: (in, out))."""
    dims = [s_dim, hidden, hidden, hidden, hidden, a_dim]
    params = []
    for i in range(5):
        key, kw, kb = jax.random.split(key, 3)
        bound = 1.0 / jnp.sqrt(jnp.float32(dims[i]))
        w = jax.random.uniform(kw, (dims[i], dims[i + 1]), jnp.float32, -bound, bound)
        b = jax.random.uniform(kb, (1, dims[i + 1]), jnp.float32, -bound, bound)
        params.append((w, b))
    return params


def reference_forward(x, params):
    """Pure-JAX f32 reference matching the PyTorch module semantics."""
    h = x
    for i, (w, b) in enumerate(params):
        h = h @ w + b
        if i < len(params) - 1:
            h = jax.nn.sigmoid(h)
    return jax.nn.softmax(h, axis=1)


# TODO(synk): act()'s Categorical sampling / log_prob is host-side distribution logic, not
# part of the forward pass, so it is left outside the kernel.

if __name__ == "__main__":
    key = jax.random.PRNGKey(0)
    B, S, A, H = 8, 16, 8, 64

    key, kx = jax.random.split(key)
    x = jax.random.normal(kx, (B, S), jnp.float32)
    params = init_params(key, S, A, hidden=H)
    prepared = prepare_params(params)

    # Single-tile path.
    out = jax.block_until_ready(discrete_policy_forward(x, prepared))
    ref = reference_forward(x, params)
    assert out.shape == (B, A)
    # bf16 MXU operands + bf16 inter-layer activations => relaxed tolerance vs f32 reference.
    assert jnp.allclose(out, ref, atol=2e-2, rtol=2e-2), "mismatch vs reference (single tile)"
    assert jnp.allclose(jnp.sum(out, axis=1), 1.0, atol=1e-3), "rows do not sum to 1"

    # Multi-tile path: grid > 1, batch padding, output slicing.
    key, kx2 = jax.random.split(key)
    x2 = jax.random.normal(kx2, (40, S), jnp.float32)
    out2 = jax.block_until_ready(discrete_policy_forward(x2, prepared, block_b=32))
    ref2 = reference_forward(x2, params)
    assert out2.shape == (40, A)
    assert jnp.allclose(out2, ref2, atol=2e-2, rtol=2e-2), "mismatch vs reference (multi tile)"
    assert jnp.allclose(jnp.sum(out2, axis=1), 1.0, atol=1e-3), "rows do not sum to 1 (multi tile)"

    print("KERNEL_OK")
</pallas_src>

<mosaic_0001>
module attributes {stable_mosaic.version = 11 : i64} {
  func.func @kernel(%arg0: i32, %arg1: memref<16x16xbf16, #tpu.memory_space<vmem>>, %arg2: memref<272x64xbf16, #tpu.memory_space<vmem>>, %arg3: memref<5x64xf32, #tpu.memory_space<vmem>>, %arg4: memref<16x8xf32, #tpu.memory_space<vmem>>) attributes {dimension_semantics = [#tpu.dimension_semantics<parallel>], iteration_bounds = array<i64: 1>, scalar_prefetch = 0 : i64, scratch_operands = 0 : i64, tpu.core_type = #tpu.core_type<tc>, window_params = [{transform_indices = @transform_0, window_bounds = array<i64: 16, 16>}, {pipeline_mode = #tpu.pipeline_mode<synchronous>, transform_indices = @transform_1, window_bounds = array<i64: 272, 64>}, {pipeline_mode = #tpu.pipeline_mode<synchronous>, transform_indices = @transform_2, window_bounds = array<i64: 5, 64>}, {transform_indices = @transform_3, window_bounds = array<i64: 16, 8>}]} {
    %c0 = arith.constant 0 : index
    %c0_0 = arith.constant 0 : index
    %0 = vector.load %arg1[%c0, %c0_0] : memref<16x16xbf16, #tpu.memory_space<vmem>>, vector<16x16xbf16>
    %c0_1 = arith.constant 0 : index
    %c0_2 = arith.constant 0 : index
    %1 = vector.load %arg2[%c0_1, %c0_2] : memref<272x64xbf16, #tpu.memory_space<vmem>>, vector<16x64xbf16>
    %cst = arith.constant dense<0.000000e+00> : vector<16x64xf32>
    %2 = tpu.matmul %0, %1, %cst {dimension_numbers = #tpu.dot_dimension_numbers<[1], [0], [0], [1], [0, 0, 1, 1], [], []>} : vector<16x16xbf16>, vector<16x64xbf16>, vector<16x64xf32> -> vector<16x64xf32>
    %c0_3 = arith.constant 0 : index
    %c0_4 = arith.constant 0 : index
    %3 = vector.load %arg3[%c0_3, %c0_4] : memref<5x64xf32, #tpu.memory_space<vmem>>, vector<1x64xf32>
    %4 = vector.broadcast %3 : vector<1x64xf32> to vector<16x64xf32>
    %5 = arith.addf %2, %4 : vector<16x64xf32>
    %cst_5 = arith.constant 5.000000e-01 : f32
    %6 = vector.broadcast %cst_5 : f32 to vector<16x64xf32>
    %7 = arith.mulf %6, %5 : vector<16x64xf32>
    %8 = math.tanh %7 : vector<16x64xf32>
    %cst_6 = arith.constant 5.000000e-01 : f32
    %9 = vector.broadcast %cst_6 : f32 to vector<16x64xf32>
    %10 = arith.mulf %9, %8 : vector<16x64xf32>
    %cst_7 = arith.constant 5.000000e-01 : f32
    %11 = vector.broadcast %cst_7 : f32 to vector<16x64xf32>
    %12 = arith.addf %10, %11 : vector<16x64xf32>
    %13 = arith.truncf %12 : vector<16x64xf32> to vector<16x64xbf16>
    %c16 = arith.constant 16 : index
    %c0_8 = arith.constant 0 : index
    %14 = vector.load %arg2[%c16, %c0_8] : memref<272x64xbf16, #tpu.memory_space<vmem>>, vector<64x64xbf16>
    %cst_9 = arith.constant dense<0.000000e+00> : vector<16x64xf32>
    %15 = tpu.matmul %13, %14, %cst_9 {dimension_numbers = #tpu.dot_dimension_numbers<[1], [0], [0], [1], [0, 0, 1, 1], [], []>} : vector<16x64xbf16>, vector<64x64xbf16>, vector<16x64xf32> -> vector<16x64xf32>
    %c1 = arith.constant 1 : index
    %c0_10 = arith.constant 0 : index
    %16 = vector.load %arg3[%c1, %c0_10] : memref<5x64xf32, #tpu.memory_space<vmem>>, vector<1x64xf32>
    %17 = vector.broadcast %16 : vector<1x64xf32> to vector<16x64xf32>
    %18 = arith.addf %15, %17 : vector<16x64xf32>
    %cst_11 = arith.constant 5.000000e-01 : f32
    %19 = vector.broadcast %cst_11 : f32 to vector<16x64xf32>
    %20 = arith.mulf %19, %18 : vector<16x64xf32>
    %21 = math.tanh %20 : vector<16x64xf32>
    %cst_12 = arith.constant 5.000000e-01 : f32
    %22 = vector.broadcast %cst_12 : f32 to vector<16x64xf32>
    %23 = arith.mulf %22, %21 : vector<16x64xf32>
    %cst_13 = arith.constant 5.000000e-01 : f32
    %24 = vector.broadcast %cst_13 : f32 to vector<16x64xf32>
    %25 = arith.addf %23, %24 : vector<16x64xf32>
    %26 = arith.truncf %25 : vector<16x64xf32> to vector<16x64xbf16>
    %c80 = arith.constant 80 : index
    %c0_14 = arith.constant 0 : index
    %27 = vector.load %arg2[%c80, %c0_14] : memref<272x64xbf16, #tpu.memory_space<vmem>>, vector<64x64xbf16>
    %cst_15 = arith.constant dense<0.000000e+00> : vector<16x64xf32>
    %28 = tpu.matmul %26, %27, %cst_15 {dimension_numbers = #tpu.dot_dimension_numbers<[1], [0], [0], [1], [0, 0, 1, 1], [], []>} : vector<16x64xbf16>, vector<64x64xbf16>, vector<16x64xf32> -> vector<16x64xf32>
    %c2 = arith.constant 2 : index
    %c0_16 = arith.constant 0 : index
    %29 = vector.load %arg3[%c2, %c0_16] : memref<5x64xf32, #tpu.memory_space<vmem>>, vector<1x64xf32>
    %30 = vector.broadcast %29 : vector<1x64xf32> to vector<16x64xf32>
    %31 = arith.addf %28, %30 : vector<16x64xf32>
    %cst_17 = arith.constant 5.000000e-01 : f32
    %32 = vector.broadcast %cst_17 : f32 to vector<16x64xf32>
    %33 = arith.mulf %32, %31 : vector<16x64xf32>
    %34 = math.tanh %33 : vector<16x64xf32>
    %cst_18 = arith.constant 5.000000e-01 : f32
    %35 = vector.broadcast %cst_18 : f32 to vector<16x64xf32>
    %36 = arith.mulf %35, %34 : vector<16x64xf32>
    %cst_19 = arith.constant 5.000000e-01 : f32
    %37 = vector.broadcast %cst_19 : f32 to vector<16x64xf32>
    %38 = arith.addf %36, %37 : vector<16x64xf32>
    %39 = arith.truncf %38 : vector<16x64xf32> to vector<16x64xbf16>
    %c144 = arith.constant 144 : index
    %c0_20 = arith.constant 0 : index
    %40 = vector.load %arg2[%c144, %c0_20] : memref<272x64xbf16, #tpu.memory_space<vmem>>, vector<64x64xbf16>
    %cst_21 = arith.constant dense<0.000000e+00> : vector<16x64xf32>
    %41 = tpu.matmul %39, %40, %cst_21 {dimension_numbers = #tpu.dot_dimension_numbers<[1], [0], [0], [1], [0, 0, 1, 1], [], []>} : vector<16x64xbf16>, vector<64x64xbf16>, vector<16x64xf32> -> vector<16x64xf32>
    %c3 = arith.constant 3 : index
    %c0_22 = arith.constant 0 : index
    %42 = vector.load %arg3[%c3, %c0_22] : memref<5x64xf32, #tpu.memory_space<vmem>>, vector<1x64xf32>
    %43 = vector.broadcast %42 : vector<1x64xf32> to vector<16x64xf32>
    %44 = arith.addf %41, %43 : vector<16x64xf32>
    %cst_23 = arith.constant 5.000000e-01 : f32
    %45 = vector.broadcast %cst_23 : f32 to vector<16x64xf32>
    %46 = arith.mulf %45, %44 : vector<16x64xf32>
    %47 = math.tanh %46 : vector<16x64xf32>
    %cst_24 = arith.constant 5.000000e-01 : f32
    %48 = vector.broadcast %cst_24 : f32 to vector<16x64xf32>
    %49 = arith.mulf %48, %47 : vector<16x64xf32>
    %cst_25 = arith.constant 5.000000e-01 : f32
    %50 = vector.broadcast %cst_25 : f32 to vector<16x64xf32>
    %51 = arith.addf %49, %50 : vector<16x64xf32>
    %52 = arith.truncf %51 : vector<16x64xf32> to vector<16x64xbf16>
    %c208 = arith.constant 208 : index
    %c0_26 = arith.constant 0 : index
    %53 = vector.load %arg2[%c208, %c0_26] : memref<272x64xbf16, #tpu.memory_space<vmem>>, vector<64x8xbf16>
    %cst_27 = arith.constant dense<0.000000e+00> : vector<16x8xf32>
    %54 = tpu.matmul %52, %53, %cst_27 {dimension_numbers = #tpu.dot_dimension_numbers<[1], [0], [0], [1], [0, 0, 1, 1], [], []>} : vector<16x64xbf16>, vector<64x8xbf16>, vector<16x8xf32> -> vector<16x8xf32>
    %c4 = arith.constant 4 : index
    %c0_28 = arith.constant 0 : index
    %55 = vector.load %arg3[%c4, %c0_28] : memref<5x64xf32, #tpu.memory_space<vmem>>, vector<1x8xf32>
    %56 = vector.broadcast %55 : vector<1x8xf32> to vector<16x8xf32>
    %57 = arith.addf %54, %56 : vector<16x8xf32>
    %cst_29 = arith.constant dense<0xFF800000> : vector<16xf32>
    %58 = vector.multi_reduction <maximumf>, %57, %cst_29 [1] : vector<16x8xf32> to vector<16xf32>
    %59 = vector.shape_cast %58 : vector<16xf32> to vector<16x1xf32>
    %60 = vector.broadcast %59 : vector<16x1xf32> to vector<16x8xf32>
    %61 = arith.subf %57, %60 : vector<16x8xf32>
    %62 = math.exp %61 : vector<16x8xf32>
    %cst_30 = arith.constant dense<0.000000e+00> : vector<16xf32>
    %63 = vector.multi_reduction <add>, %62, %cst_30 [1] : vector<16x8xf32> to vector<16xf32>
    %64 = vector.shape_cast %63 : vector<16xf32> to vector<16x1xf32>
    %65 = vector.broadcast %64 : vector<16x1xf32> to vector<16x8xf32>
    %66 = arith.divf %62, %65 : vector<16x8xf32>
    %c0_31 = arith.constant 0 : index
    %c0_32 = arith.constant 0 : index
    %67 = vector.load %arg4[%c0_31, %c0_32] : memref<16x8xf32, #tpu.memory_space<vmem>>, vector<16x8xf32>
    tpu.vector_store %arg4[%c0_31, %c0_32], %66 {strides = array<i32>} : memref<16x8xf32, #tpu.memory_space<vmem>>, vector<16x8xf32>,
    return
  }
  func.func @transform_0(%arg0: i32) -> (i32, i32) {
    %c0_i32 = arith.constant 0 : i32
    %c0_i32_0 = arith.constant 0 : i32
    return %arg0, %c0_i32 : i32, i32
  }
  func.func @transform_1(%arg0: i32) -> (i32, i32) {
    %c0_i32 = arith.constant 0 : i32
    %c0_i32_0 = arith.constant 0 : i32
    %c0_i32_1 = arith.constant 0 : i32
    return %c0_i32, %c0_i32_0 : i32, i32
  }
  func.func @transform_2(%arg0: i32) -> (i32, i32) {
    %c0_i32 = arith.constant 0 : i32
    %c0_i32_0 = arith.constant 0 : i32
    %c0_i32_1 = arith.constant 0 : i32
    return %c0_i32, %c0_i32_0 : i32, i32
  }
  func.func @transform_3(%arg0: i32) -> (i32, i32) {
    %c0_i32 = arith.constant 0 : i32
    %c0_i32_0 = arith.constant 0 : i32
    return %arg0, %c0_i32 : i32, i32
  }
}

</mosaic_0001>

<llo_original>
// kernel: tpu_custom_call.1
$region0: #{tpu_custom_call.1}
  #allocation0 [shape = 'u32[]', space=smem, size = 0x4, offset = 0x4, fixed_abs, tag = 'smem constant byte address 0x4 - core index']
  #allocation1 [shape = 'u32[144,128]{1,0:T(1,128)}', space=vmem, size = 0x12000, scoped, tag = 'internal scratch']
  %s0 = inlined_call_operand.vmem [shape: bf16[16,16], index: 0, kind: input, shape index: {}]
  %s1 = inlined_call_operand.vmem [shape: bf16[272,64], index: 1, kind: input, shape index: {}]
  %s2 = inlined_call_operand.vmem [shape: f32[5,64], index: 2, kind: input, shape index: {}]
  %s3 = inlined_call_operand.vmem [shape: f32[16,8], index: 3, kind: output, shape index: {}]
  %s4 = sld [smem:[#allocation0]]
  $region22: #{tpu_custom_call.1} parent=0
    _
  %s6 = ssub.s32 1, %s4
  %s7 = scalar_select 0, %s6, %s4
  // Predicated region
  $region2: #{tpu_custom_call.1} parent=0 // pred_check
    _
  $region3: #{tpu_custom_call.1} parent=0 // pred_check_branch
    %9 = sbr.rel (0) target = $region5
  $region4: #{tpu_custom_call.1} parent=0 // pred_region
    _
  $region5: #{tpu_custom_call.1} parent=0 // pred_fallthru
    _
  // Predicated region
  $region6: #{tpu_custom_call.1} parent=0 // pred_check
    _
  $region7: #{tpu_custom_call.1} parent=0 // pred_check_branch
    %11 = sbr.rel (0) target = $region9
  $region8: #{tpu_custom_call.1} parent=0 // pred_region
    _
  $region9: #{tpu_custom_call.1} parent=0 // pred_fallthru
    _
  // Predicated region
  $region10: #{tpu_custom_call.1} parent=0 // pred_check
    _
  $region11: #{tpu_custom_call.1} parent=0 // pred_check_branch
    %13 = sbr.rel (0) target = $region13
  $region12: #{tpu_custom_call.1} parent=0 // pred_region
    _
  $region13: #{tpu_custom_call.1} parent=0 // pred_fallthru
    _
  %v15 = vld [vmem:[%s0] sm:$0xf]
  %v16 = vld [vmem:[%s0 + $0x4] sm:$0xf]
  %v17 = vld [vmem:[%s1] sm:$0xf]
  %v18 = vld [vmem:[%s1 + $0x4] sm:$0xf]
  %v19 = vld [vmem:[%s2] sm:$0x1]
  %v20 = vlaneseq
  %v21 = vshrl.u32 %v20, 7
  %v22 = vsub.s32 0, %v21
  %v23 = vrot.slane %v19, %v22
  %v26 = vunpack.c.l.b16 %v15
  %v27 = vunpack.c.l.b16 %v16
  %v28 = vpack.c.b16 %v27, %v26
  %v31 = vunpack.c.l.b16 %v17
  %v32 = vunpack.c.l.b16 %v18
  %v33 = vpack.c.b16 %v32, %v31
  %vm35 = vcmask 130048
  %v37 = vsel %vm35, %v28, 0
  %39 = vmatprep.subr.bf16.mxu0 0
  %40 = vmatpush1.bf16.msra.mxu0 %v33
  %41 = vmatprep.subr.bf16.mxu0 0
  %42 = vmatpush1.bf16.msra.mxu0 0
  %43 = vmatprep.subr.bf16.mxu0 0
  %44 = vmatpush1.bf16.msra.mxu0 0
  %45 = vmatprep.subr.bf16.mxu0 0
  %46 = vmatpush1.bf16.msra.mxu0 0
  %47 = vmatprep.subr.bf16.mxu0 0
  %48 = vmatpush1.bf16.msra.mxu0 0
  %49 = vmatprep.subr.bf16.mxu0 0
  %50 = vmatpush1.bf16.msra.mxu0 0
  %51 = vmatprep.subr.bf16.mxu0 0
  %52 = vmatpush1.bf16.msra.mxu0 0
  %53 = vmatprep.subr.bf16.mxu0 0
  %54 = vmatpush1.bf16.msra.mxu0 0
  %55 = vmatprep.subr.bf16.mxu0 0
  %56 = vmatpush1.bf16.msra.mxu0 0
  %57 = vmatprep.subr.bf16.mxu0 0
  %58 = vmatpush1.bf16.msra.mxu0 0
  %59 = vmatprep.subr.bf16.mxu0 0
  %60 = vmatpush1.bf16.msra.mxu0 0
  %61 = vmatprep.subr.bf16.mxu0 0
  %62 = vmatpush1.bf16.msra.mxu0 0
  %63 = vmatprep.subr.bf16.mxu0 0
  %64 = vmatpush1.bf16.msra.mxu0 0
  %65 = vmatprep.subr.bf16.mxu0 0
  %66 = vmatpush1.bf16.msra.mxu0 0
  %67 = vmatprep.subr.bf16.mxu0 0
  %68 = vmatpush1.bf16.msra.mxu0 0
  %69 = vmatprep.subr.bf16.mxu0 0
  %70 = vmatpush1.bf16.msra.mxu0 0
  %71 = vmatprep.mubr.bf16.mxu0 0
  %72 = vmatmul.mubr.bf16.gmra.mrb[0].mxu0 %v37
  %v73 = vpop.f32.mrb[0].mxu0
  %v74 = vadd.f32 %v23, %v73
  %v75 = vpop.f32.mrb[0].mxu0
  %v76 = vpop.f32.mrb[0].mxu0
  %v77 = vadd.f32 %v23, %v76
  %v78 = vpop.f32.mrb[0].mxu0
  %79 = vdwg.mxu0
  %v80 = vmul.f32 %v74, 0.5
  %v81 = vmul.f32 %v77, 0.5
  %v82 = vtanh.pop %v80
  %v83 = vtanh.pop %v81
  %v84 = vmul.f32 %v82, 0.5
  %v85 = vmul.f32 %v83, 0.5
  %v86 = vadd.f32 %v84, 0.5
  %v87 = vadd.f32 %v85, 0.5
  %v88 = vpack.c.bf16 %v87, %v86
  %v89 = vld [vmem:[%s1 + $0x8] sm:$0xf]
  %v90 = vld [vmem:[%s1 + $0xc] sm:$0xf]
  %v91 = vld [vmem:[%s1 + $0x10] sm:$0xf]
  %v92 = vld [vmem:[%s1 + $0x14] sm:$0xf]
  %v93 = vld [vmem:[%s1 + $0x18] sm:$0xf]
  %v94 = vld [vmem:[%s1 + $0x1c] sm:$0xf]
  %v95 = vld [vmem:[%s1 + $0x20] sm:$0xf]
  %v96 = vld [vmem:[%s1 + $0x24] sm:$0xf]
  %v97 = vld [vmem:[%s2 + $0x1] sm:$0x1]
  %v98 = vlaneseq
  %v99 = vshrl.u32 %v98, 7
  %v100 = vsub.s32 0, %v99
  %v101 = vrot.slane %v97, %v100
  %v110 = vunpack.c.l.b16 %v89
  %v111 = vunpack.c.l.b16 %v90
  %v112 = vunpack.c.l.b16 %v91
  %v113 = vunpack.c.l.b16 %v92
  %v114 = vunpack.c.l.b16 %v93
  %v115 = vunpack.c.l.b16 %v94
  %v116 = vunpack.c.l.b16 %v95
  %v117 = vunpack.c.l.b16 %v96
  %v118 = vpack.c.b16 %v111, %v110
  %v119 = vpack.c.b16 %v113, %v112
  %v120 = vpack.c.b16 %v115, %v114
  %v121 = vpack.c.b16 %v117, %v116
  %vm126 = vcmask 523264
  %v128 = vsel %vm126, %v88, 0
  %130 = vmatprep.subr.bf16.mxu0 0
  %131 = vmatpush1.bf16.msra.mxu0 %v118
  %132 = vmatprep.subr.bf16.mxu0 0
  %133 = vmatpush1.bf16.msra.mxu0 %v119
  %134 = vmatprep.subr.bf16.mxu0 0
  %135 = vmatpush1.bf16.msra.mxu0 %v120
  %136 = vmatprep.subr.bf16.mxu0 0
  %137 = vmatpush1.bf16.msra.mxu0 %v121
  %138 = vmatprep.subr.bf16.mxu0 0
  %139 = vmatpush1.bf16.msra.mxu0 0
  %140 = vmatprep.subr.bf16.mxu0 0
  %141 = vmatpush1.bf16.msra.mxu0 0
  %142 = vmatprep.subr.bf16.mxu0 0
  %143 = vmatpush1.bf16.msra.mxu0 0
  %144 = vmatprep.subr.bf16.mxu0 0
  %145 = vmatpush1.bf16.msra.mxu0 0
  %146 = vmatprep.subr.bf16.mxu0 0
  %147 = vmatpush1.bf16.msra.mxu0 0
  %148 = vmatprep.subr.bf16.mxu0 0
  %149 = vmatpush1.bf16.msra.mxu0 0
  %150 = vmatprep.subr.bf16.mxu0 0
  %151 = vmatpush1.bf16.msra.mxu0 0
  %152 = vmatprep.subr.bf16.mxu0 0
  %153 = vmatpush1.bf16.msra.mxu0 0
  %154 = vmatprep.subr.bf16.mxu0 0
  %155 = vmatpush1.bf16.msra.mxu0 0
  %156 = vmatprep.subr.bf16.mxu0 0
  %157 = vmatpush1.bf16.msra.mxu0 0
  %158 = vmatprep.subr.bf16.mxu0 0
  %159 = vmatpush1.bf16.msra.mxu0 0
  %160 = vmatprep.subr.bf16.mxu0 0
  %161 = vmatpush1.bf16.msra.mxu0 0
  %162 = vmatprep.mubr.bf16.mxu0 0
  %163 = vmatmul.mubr.bf16.gmra.mrb[0].mxu0 %v128
  %v164 = vpop.f32.mrb[0].mxu0
  %v165 = vadd.f32 %v101, %v164
  %v166 = vpop.f32.mrb[0].mxu0
  %v167 = vpop.f32.mrb[0].mxu0
  %v168 = vadd.f32 %v101, %v167
  %v169 = vpop.f32.mrb[0].mxu0
  %170 = vdwg.mxu0
  %v171 = vmul.f32 %v165, 0.5
  %v172 = vmul.f32 %v168, 0.5
  %v173 = vtanh.pop %v171
  %v174 = vtanh.pop %v172
  %v175 = vmul.f32 %v173, 0.5
  %v176 = vmul.f32 %v174, 0.5
  %v177 = vadd.f32 %v175, 0.5
  %v178 = vadd.f32 %v176, 0.5
  %v179 = vpack.c.bf16 %v178, %v177
  %v180 = vld [vmem:[%s1 + $0x28] sm:$0xf]
  %v181 = vld [vmem:[%s1 + $0x2c] sm:$0xf]
  %v182 = vld [vmem:[%s1 + $0x30] sm:$0xf]
  %v183 = vld [vmem:[%s1 + $0x34] sm:$0xf]
  %v184 = vld [vmem:[%s1 + $0x38] sm:$0xf]
  %v185 = vld [vmem:[%s1 + $0x3c] sm:$0xf]
  %v186 = vld [vmem:[%s1 + $0x40] sm:$0xf]
  %v187 = vld [vmem:[%s1 + $0x44] sm:$0xf]
  %v188 = vld [vmem:[%s2 + $0x2] sm:$0x1]
  %v189 = vlaneseq
  %v190 = vshrl.u32 %v189, 7
  %v191 = vsub.s32 0, %v190
  %v192 = vrot.slane %v188, %v191
  %v201 = vunpack.c.l.b16 %v180
  %v202 = vunpack.c.l.b16 %v181
  %v203 = vunpack.c.l.b16 %v182
  %v204 = vunpack.c.l.b16 %v183
  %v205 = vunpack.c.l.b16 %v184
  %v206 = vunpack.c.l.b16 %v185
  %v207 = vunpack.c.l.b16 %v186
  %v208 = vunpack.c.l.b16 %v187
  %v209 = vpack.c.b16 %v202, %v201
  %v210 = vpack.c.b16 %v204, %v203
  %v211 = vpack.c.b16 %v206, %v205
  %v212 = vpack.c.b16 %v208, %v207
  %v218 = vsel %vm126, %v179, 0
  %220 = vmatprep.subr.bf16.mxu0 0
  %221 = vmatpush1.bf16.msra.mxu0 %v209
  %222 = vmatprep.subr.bf16.mxu0 0
  %223 = vmatpush1.bf16.msra.mxu0 %v210
  %224 = vmatprep.subr.bf16.mxu0 0
  %225 = vmatpush1.bf16.msra.mxu0 %v211
  %226 = vmatprep.subr.bf16.mxu0 0
  %227 = vmatpush1.bf16.msra.mxu0 %v212
  %228 = vmatprep.subr.bf16.mxu0 0
  %229 = vmatpush1.bf16.msra.mxu0 0
  %230 = vmatprep.subr.bf16.mxu0 0
  %231 = vmatpush1.bf16.msra.mxu0 0
  %232 = vmatprep.subr.bf16.mxu0 0
  %233 = vmatpush1.bf16.msra.mxu0 0
  %234 = vmatprep.subr.bf16.mxu0 0
  %235 = vmatpush1.bf16.msra.mxu0 0
  %236 = vmatprep.subr.bf16.mxu0 0
  %237 = vmatpush1.bf16.msra.mxu0 0
  %238 = vmatprep.subr.bf16.mxu0 0
  %239 = vmatpush1.bf16.msra.mxu0 0
  %240 = vmatprep.subr.bf16.mxu0 0
  %241 = vmatpush1.bf16.msra.mxu0 0
  %242 = vmatprep.subr.bf16.mxu0 0
  %243 = vmatpush1.bf16.msra.mxu0 0
  %244 = vmatprep.subr.bf16.mxu0 0
  %245 = vmatpush1.bf16.msra.mxu0 0
  %246 = vmatprep.subr.bf16.mxu0 0
  %247 = vmatpush1.bf16.msra.mxu0 0
  %248 = vmatprep.subr.bf16.mxu0 0
  %249 = vmatpush1.bf16.msra.mxu0 0
  %250 = vmatprep.subr.bf16.mxu0 0
  %251 = vmatpush1.bf16.msra.mxu0 0
  %252 = vmatprep.mubr.bf16.mxu0 0
  %253 = vmatmul.mubr.bf16.gmra.mrb[0].mxu0 %v218
  %v254 = vpop.f32.mrb[0].mxu0
  %v255 = vadd.f32 %v192, %v254
  %v256 = vpop.f32.mrb[0].mxu0
  %v257 = vpop.f32.mrb[0].mxu0
  %v258 = vadd.f32 %v192, %v257
  %v259 = vpop.f32.mrb[0].mxu0
  %260 = vdwg.mxu0
  %v261 = vmul.f32 %v255, 0.5
  %v262 = vmul.f32 %v258, 0.5
  %v263 = vtanh.pop %v261
  %v264 = vtanh.pop %v262
  %v265 = vmul.f32 %v263, 0.5
  %v266 = vmul.f32 %v264, 0.5
  %v267 = vadd.f32 %v265, 0.5
  %v268 = vadd.f32 %v266, 0.5
  %v269 = vpack.c.bf16 %v268, %v267
  %v270 = vld [vmem:[%s1 + $0x48] sm:$0xf]
  %v271 = vld [vmem:[%s1 + $0x4c] sm:$0xf]
  %v272 = vld [vmem:[%s1 + $0x50] sm:$0xf]
  %v273 = vld [vmem:[%s1 + $0x54] sm:$0xf]
  %v274 = vld [vmem:[%s1 + $0x58] sm:$0xf]
  %v275 = vld [vmem:[%s1 + $0x5c] sm:$0xf]
  %v276 = vld [vmem:[%s1 + $0x60] sm:$0xf]
  %v277 = vld [vmem:[%s1 + $0x64] sm:$0xf]
  %v278 = vld [vmem:[%s2 + $0x3] sm:$0x1]
  %v279 = vlaneseq
  %v280 = vshrl.u32 %v279, 7
  %v281 = vsub.s32 0, %v280
  %v282 = vrot.slane %v278, %v281
  %v291 = vunpack.c.l.b16 %v270
  %v292 = vunpack.c.l.b16 %v271
  %v293 = vunpack.c.l.b16 %v272
  %v294 = vunpack.c.l.b16 %v273
  %v295 = vunpack.c.l.b16 %v274
  %v296 = vunpack.c.l.b16 %v275
  %v297 = vunpack.c.l.b16 %v276
  %v298 = vunpack.c.l.b16 %v277
  %v299 = vpack.c.b16 %v292, %v291
  %v300 = vpack.c.b16 %v294, %v293
  %v301 = vpack.c.b16 %v296, %v295
  %v302 = vpack.c.b16 %v298, %v297
  %v308 = vsel %vm126, %v269, 0
  %310 = vmatprep.subr.bf16.mxu0 0
  %311 = vmatpush1.bf16.msra.mxu0 %v299
  %312 = vmatprep.subr.bf16.mxu0 0
  %313 = vmatpush1.bf16.msra.mxu0 %v300
  %314 = vmatprep.subr.bf16.mxu0 0
  %315 = vmatpush1.bf16.msra.mxu0 %v301
  %316 = vmatprep.subr.bf16.mxu0 0
  %317 = vmatpush1.bf16.msra.mxu0 %v302
  %318 = vmatprep.subr.bf16.mxu0 0
  %319 = vmatpush1.bf16.msra.mxu0 0
  %320 = vmatprep.subr.bf16.mxu0 0
  %321 = vmatpush1.bf16.msra.mxu0 0
  %322 = vmatprep.subr.bf16.mxu0 0
  %323 = vmatpush1.bf16.msra.mxu0 0
  %324 = vmatprep.subr.bf16.mxu0 0
  %325 = vmatpush1.bf16.msra.mxu0 0
  %326 = vmatprep.subr.bf16.mxu0 0
  %327 = vmatpush1.bf16.msra.mxu0 0
  %328 = vmatprep.subr.bf16.mxu0 0
  %329 = vmatpush1.bf16.msra.mxu0 0
  %330 = vmatprep.subr.bf16.mxu0 0
  %331 = vmatpush1.bf16.msra.mxu0 0
  %332 = vmatprep.subr.bf16.mxu0 0
  %333 = vmatpush1.bf16.msra.mxu0 0
  %334 = vmatprep.subr.bf16.mxu0 0
  %335 = vmatpush1.bf16.msra.mxu0 0
  %336 = vmatprep.subr.bf16.mxu0 0
  %337 = vmatpush1.bf16.msra.mxu0 0
  %338 = vmatprep.subr.bf16.mxu0 0
  %339 = vmatpush1.bf16.msra.mxu0 0
  %340 = vmatprep.subr.bf16.mxu0 0
  %341 = vmatpush1.bf16.msra.mxu0 0
  %342 = vmatprep.mubr.bf16.mxu0 0
  %343 = vmatmul.mubr.bf16.gmra.mrb[0].mxu0 %v308
  %v344 = vpop.f32.mrb[0].mxu0
  %v345 = vadd.f32 %v282, %v344
  %v346 = vpop.f32.mrb[0].mxu0
  %v347 = vpop.f32.mrb[0].mxu0
  %v348 = vadd.f32 %v282, %v347
  %v349 = vpop.f32.mrb[0].mxu0
  %350 = vdwg.mxu0
  %v351 = vmul.f32 %v345, 0.5
  %v352 = vmul.f32 %v348, 0.5
  %v353 = vtanh.pop %v351
  %v354 = vtanh.pop %v352
  %v355 = vmul.f32 %v353, 0.5
  %v356 = vmul.f32 %v354, 0.5
  %v357 = vadd.f32 %v355, 0.5
  %v358 = vadd.f32 %v356, 0.5
  %v359 = vpack.c.bf16 %v358, %v357
  %v360 = vld [vmem:[%s1 + $0x68] sm:$0xf]
  %v361 = vld [vmem:[%s1 + $0x6c] sm:$0xf]
  %v362 = vld [vmem:[%s1 + $0x70] sm:$0xf]
  %v363 = vld [vmem:[%s1 + $0x74] sm:$0xf]
  %v364 = vld [vmem:[%s1 + $0x78] sm:$0xf]
  %v365 = vld [vmem:[%s1 + $0x7c] sm:$0xf]
  %v366 = vld [vmem:[%s1 + $0x80] sm:$0xf]
  %v367 = vld [vmem:[%s1 + $0x84] sm:$0xf]
  %v368 = vld [vmem:[%s2 + $0x4] sm:$0x1]
  %v369 = vlaneseq
  %v370 = vshrl.u32 %v369, 7
  %v371 = vsub.s32 0, %v370
  %v372 = vrot.slane %v368, %v371
  %v381 = vunpack.c.l.b16 %v360
  %v382 = vunpack.c.l.b16 %v361
  %v383 = vunpack.c.l.b16 %v362
  %v384 = vunpack.c.l.b16 %v363
  %v385 = vunpack.c.l.b16 %v364
  %v386 = vunpack.c.l.b16 %v365
  %v387 = vunpack.c.l.b16 %v366
  %v388 = vunpack.c.l.b16 %v367
  %v389 = vpack.c.b16 %v382, %v381
  %v390 = vpack.c.b16 %v384, %v383
  %v391 = vpack.c.b16 %v386, %v385
  %v392 = vpack.c.b16 %v388, %v387
  %v398 = vsel %vm126, %v359, 0
  %400 = vmatprep.subr.bf16.mxu0 0
  %401 = vmatpush1.bf16.msra.mxu0 %v389
  %402 = vmatprep.subr.bf16.mxu0 0
  %403 = vmatpush1.bf16.msra.mxu0 %v390
  %404 = vmatprep.subr.bf16.mxu0 0
  %405 = vmatpush1.bf16.msra.mxu0 %v391
  %406 = vmatprep.subr.bf16.mxu0 0
  %407 = vmatpush1.bf16.msra.mxu0 %v392
  %408 = vmatprep.subr.bf16.mxu0 0
  %409 = vmatpush1.bf16.msra.mxu0 0
  %410 = vmatprep.subr.bf16.mxu0 0
  %411 = vmatpush1.bf16.msra.mxu0 0
  %412 = vmatprep.subr.bf16.mxu0 0
  %413 = vmatpush1.bf16.msra.mxu0 0
  %414 = vmatprep.subr.bf16.mxu0 0
  %415 = vmatpush1.bf16.msra.mxu0 0
  %416 = vmatprep.subr.bf16.mxu0 0
  %417 = vmatpush1.bf16.msra.mxu0 0
  %418 = vmatprep.subr.bf16.mxu0 0
  %419 = vmatpush1.bf16.msra.mxu0 0
  %420 = vmatprep.subr.bf16.mxu0 0
  %421 = vmatpush1.bf16.msra.mxu0 0
  %422 = vmatprep.subr.bf16.mxu0 0
  %423 = vmatpush1.bf16.msra.mxu0 0
  %424 = vmatprep.subr.bf16.mxu0 0
  %425 = vmatpush1.bf16.msra.mxu0 0
  %426 = vmatprep.subr.bf16.mxu0 0
  %427 = vmatpush1.bf16.msra.mxu0 0
  %428 = vmatprep.subr.bf16.mxu0 0
  %429 = vmatpush1.bf16.msra.mxu0 0
  %430 = vmatprep.subr.bf16.mxu0 0
  %431 = vmatpush1.bf16.msra.mxu0 0
  %432 = vmatprep.mubr.bf16.mxu0 0
  %433 = vmatmul.mubr.bf16.gmra.mrb[0].mxu0 %v398
  %v434 = vpop.f32.mrb[0].mxu0
  %v435 = vadd.f32 %v372, %v434
  %v436 = vpop.f32.mrb[0].mxu0
  %v437 = vpop.f32.mrb[0].mxu0
  %v438 = vadd.f32 %v372, %v437
  %v439 = vpop.f32.mrb[0].mxu0
  %440 = vdwg.mxu0
  %vm441 = vcmask 64512
  %v442 = vsel %vm441, %v435, -inf
  %443 = vmax.xlane.f32.xlu0 %v442
  %v444 = vpop.xlane.xlu0 %443
  %v445 = vsel %vm441, %v438, -inf
  %446 = vmax.xlane.f32.xlu0 %v445
  %v447 = vpop.xlane.xlu0 %446
  %v448 = vsub.f32 %v435, %v444
  %v449 = vsub.f32 %v438, %v447
  %v450 = vmul.f32 %v448, 1.442695
  %v451 = vpow.pop %v450
  %v452 = vmul.f32 %v449, 1.442695
  %v453 = vpow.pop %v452
  %v454 = vsel %vm441, %v451, 0.0
  %455 = vadd.xlane.f32.xlu0 %v454
  %v456 = vpop.xlane.xlu0 %455
  %v457 = vsel %vm441, %v453, 0.0
  %458 = vadd.xlane.f32.xlu0 %v457
  %v459 = vpop.xlane.xlu0 %458
  %v460 = vrcp.pop %v456
  %v461 = vmul.f32 %v451, %v460
  %v462 = vrcp.pop %v459
  %v463 = vmul.f32 %v453, %v462
  %464 = vst.msk [vmem:[%s3] sm:$0xff] %vm441, %v461
  %465 = vst.msk [vmem:[%s3 + $0x8] sm:$0xff] %vm441, %v463
  // Predicated region
  $region14: #{tpu_custom_call.1} parent=0 // pred_check
    _
  $region15: #{tpu_custom_call.1} parent=0 // pred_check_branch
    %467 = sbr.rel (0) target = $region17
  $region16: #{tpu_custom_call.1} parent=0 // pred_region
    _
  $region17: #{tpu_custom_call.1} parent=0 // pred_fallthru
    _
  // Predicated region
  $region18: #{tpu_custom_call.1} parent=0 // pred_check
    _
  $region19: #{tpu_custom_call.1} parent=0 // pred_check_branch
    %469 = sbr.rel (0) target = $region21
  $region20: #{tpu_custom_call.1} parent=0 // pred_region
    _
  $region21: #{tpu_custom_call.1} parent=0 // pred_fallthru
    _

</llo_original>
